<compile_context>
chip_gen: v6e
topology: v6e:2x2x1
jax: 0.10.0
libtpu: 0.0.40
codegen_flags: <defaults>
</compile_context>

<pallas_src>
import jax
import jax.numpy as jnp
import numpy as np
from jax.experimental import pallas as pl
from jax.experimental.pallas import tpu as pltpu


def _interp_matrix(out_size: int, in_size: int) -> jnp.ndarray:
    """Linear interpolation matrix M[out, in] for align_corners=True."""
    if in_size == 1:
        return jnp.ones((out_size, 1), jnp.float32)
    p = jnp.arange(out_size, dtype=jnp.float32)
    src = p * (in_size - 1) / (out_size - 1)
    i0 = jnp.clip(jnp.floor(src).astype(jnp.int32), 0, in_size - 2)
    frac = src - i0.astype(jnp.float32)
    m = (jax.nn.one_hot(i0, in_size, dtype=jnp.float32) * (1.0 - frac)[:, None]
         + jax.nn.one_hot(i0 + 1, in_size, dtype=jnp.float32) * frac[:, None])
    return m


# ---------------- Kron-operator kernels (small/medium spatial sizes) ----------------

def _kron_conv_first_kernel(x_ref, w_ref, rT_ref, o_ref):
    # x_ref: [Cin, HW], w_ref: [Cout, Cin], rT_ref: [HW, 4HW], o_ref: [Cout, 4HW]
    x = jnp.maximum(x_ref[...], 0)                                       # ReLU (VPU)
    y = jnp.dot(w_ref[...], x, preferred_element_type=jnp.float32)       # 1x1 conv
    out = jnp.dot(y.astype(rT_ref.dtype), rT_ref[...],
                  preferred_element_type=jnp.float32)                    # bilinear (K = HW)
    o_ref[...] = out.astype(o_ref.dtype)


def _kron_interp_first_kernel(x_ref, w_ref, rT_ref, o_ref):
    # Same math; conv and interpolation commute.  Cheaper when Cin < Cout.
    x = jnp.maximum(x_ref[...], 0)                                       # ReLU
    t = jnp.dot(x, rT_ref[...], preferred_element_type=jnp.float32)      # [Cin, 4HW], K = HW
    out = jnp.dot(w_ref[...], t.astype(w_ref.dtype),
                  preferred_element_type=jnp.float32)                    # 1x1 conv
    o_ref[...] = out.astype(o_ref.dtype)


# ---------------- Separable fallback kernel (large spatial sizes) ----------------

def _separable_kernel(x_ref, w_ref, ry_ref, rxT_ref, o_ref):
    # x_ref: [Cin, H, W], w_ref: [Cout, Cin], ry_ref: [2H, H], rxT_ref: [W, 2W]
    # o_ref: [Cout, 4*H*W]  (lane-dense flattened store)
    Cin, H, W = x_ref.shape
    Cout = w_ref.shape[0]
    x = jnp.maximum(x_ref[...], 0)
    y = jnp.dot(w_ref[...], x.reshape(Cin, H * W),
                preferred_element_type=jnp.float32)                      # [Cout, HW]
    y = y.astype(rxT_ref.dtype).reshape(Cout * H, W)
    t = jnp.dot(y, rxT_ref[...], preferred_element_type=jnp.float32)     # [Cout*H, 2W]
    # Height interpolation as ONE big matmul instead of Cout tiny batched ones.
    tT = t.reshape(Cout, H, 2 * W).transpose(1, 0, 2).reshape(H, Cout * 2 * W)
    u = jnp.dot(ry_ref[...], tT.astype(ry_ref.dtype),
                preferred_element_type=jnp.float32)                      # [2H, Cout*2W]
    out = u.reshape(2 * H, Cout, 2 * W).transpose(1, 0, 2)
    o_ref[...] = out.reshape(Cout, 4 * H * W).astype(o_ref.dtype)


_KRON_BYTES_LIMIT = 8 * 1024 * 1024   # keep R^T resident in VMEM up to 8 MiB


def backward_transition_no_norm(x, conv_weight):
    """x: [N, Cin, H, W] (NCHW); conv_weight: [Cout, Cin, 1, 1]."""
    N, Cin, H, W = x.shape
    Cout = conv_weight.shape[0]
    HW = H * W
    dtype = x.dtype
    itemsize = jnp.dtype(dtype).itemsize

    w = conv_weight.reshape(Cout, Cin).astype(dtype)
    ry = _interp_matrix(2 * H, H)            # [2H, H]
    rx = _interp_matrix(2 * W, W)            # [2W, W]

    cparams = pltpu.CompilerParams(
        dimension_semantics=("parallel",),
        vmem_limit_bytes=32 * 1024 * 1024)

    kron_bytes = HW * 4 * HW * itemsize
    if kron_bytes <= _KRON_BYTES_LIMIT:
        # R[p*2W+q, h*W+w] = Ry[p,h] * Rx[q,w]  (Kronecker product), transposed.
        rT = jnp.einsum('ph,qw->pqhw', ry, rx).reshape(4 * HW, HW).T.astype(dtype)
        interp_first = Cin < Cout
        kernel = _kron_interp_first_kernel if interp_first else _kron_conv_first_kernel
        if interp_first:
            flops = N * (2 * Cin * HW * 4 * HW + 2 * Cout * Cin * 4 * HW)
        else:
            flops = N * (2 * Cout * Cin * HW + 2 * Cout * HW * 4 * HW)
        bytes_accessed = (N * Cin * HW + N * Cout * 4 * HW
                          + Cout * Cin + HW * 4 * HW) * itemsize
        out_flat = pl.pallas_call(
            kernel,
            out_shape=jax.ShapeDtypeStruct((N, Cout, 4 * HW), dtype),
            grid_spec=pltpu.PrefetchScalarGridSpec(
                num_scalar_prefetch=0,
                grid=(N,),
                in_specs=[
                    pl.BlockSpec((None, Cin, HW), lambda n: (n, 0, 0)),
                    pl.BlockSpec((Cout, Cin), lambda n: (0, 0)),
                    pl.BlockSpec((HW, 4 * HW), lambda n: (0, 0)),
                ],
                out_specs=pl.BlockSpec((None, Cout, 4 * HW), lambda n: (n, 0, 0)),
            ),
            compiler_params=cparams,
            cost_estimate=pl.CostEstimate(
                flops=flops, transcendentals=0, bytes_accessed=bytes_accessed),
        )(x.reshape(N, Cin, HW), w, rT)
    else:
        # Separable path for large spatial sizes.
        # TODO(synk): for very large Cout/H/W (v7x 64 MiB VMEM), add a Cout grid
        # axis with a constant x index_map so per-step tiles stay within VMEM.
        rxT = rx.T.astype(dtype)                 # [W, 2W]
        ryc = ry.astype(dtype)                   # [2H, H]
        flops = N * (2 * Cout * Cin * HW
                     + 2 * Cout * H * W * 2 * W
                     + 2 * 2 * H * H * Cout * 2 * W)
        bytes_accessed = (N * Cin * HW + N * Cout * 4 * HW + Cout * Cin
                          + 2 * H * H + 2 * W * W) * itemsize
        out_flat = pl.pallas_call(
            _separable_kernel,
            out_shape=jax.ShapeDtypeStruct((N, Cout, 4 * HW), dtype),
            grid_spec=pltpu.PrefetchScalarGridSpec(
                num_scalar_prefetch=0,
                grid=(N,),
                in_specs=[
                    pl.BlockSpec((None, Cin, H, W), lambda n: (n, 0, 0, 0)),
                    pl.BlockSpec((Cout, Cin), lambda n: (0, 0)),
                    pl.BlockSpec((2 * H, H), lambda n: (0, 0)),
                    pl.BlockSpec((W, 2 * W), lambda n: (0, 0)),
                ],
                out_specs=pl.BlockSpec((None, Cout, 4 * HW), lambda n: (n, 0, 0)),
            ),
            compiler_params=cparams,
            cost_estimate=pl.CostEstimate(
                flops=flops, transcendentals=0, bytes_accessed=bytes_accessed),
        )(x, w, ryc, rxT)

    # Free metadata reshape back to NCHW.
    return out_flat.reshape(N, Cout, 2 * H, 2 * W)


def _reference(x, conv_weight):
    """Pure-JAX reference of the same forward pass (for verification)."""
    N, Cin, H, W = x.shape
    Cout = conv_weight.shape[0]
    w = conv_weight.reshape(Cout, Cin).astype(jnp.float32)
    ry = _interp_matrix(2 * H, H)
    rx = _interp_matrix(2 * W, W)
    y = jnp.einsum('oc,nchw->nohw', w, jnp.maximum(x.astype(jnp.float32), 0.0))
    t = jnp.einsum('qw,nohw->nohq', rx, y)
    return jnp.einsum('ph,nohq->nopq', ry, t)


if __name__ == "__main__":
    key = jax.random.PRNGKey(0)
    kx, kw = jax.random.split(key)

    N, in_ch, H, W = 2, 4, 16, 16
    out_ch = 8

    x = jax.random.normal(kx, (N, in_ch, H, W), dtype=jnp.float32)
    # Deterministic synthetic Conv2d(in_ch, out_ch, 1, bias=False) weight.
    conv_weight = jax.random.normal(kw, (out_ch, in_ch, 1, 1),
                                    dtype=jnp.float32) * 0.1

    out = backward_transition_no_norm(x, conv_weight)
    out = jax.block_until_ready(out)

    ref = jax.block_until_ready(_reference(x, conv_weight))
    assert out.shape == (N, out_ch, 2 * H, 2 * W), out.shape
    np.testing.assert_allclose(np.asarray(out), np.asarray(ref),
                               rtol=1e-5, atol=1e-5)
    print("KERNEL_OK")
</pallas_src>

<mosaic_0001>
module attributes {stable_mosaic.version = 11 : i64} {
  func.func @_kron_interp_first_kernel(%arg0: i32, %arg1: memref<1x4x256xf32, #tpu.memory_space<vmem>>, %arg2: memref<8x4xf32, #tpu.memory_space<vmem>>, %arg3: memref<256x1024xf32, #tpu.memory_space<vmem>>, %arg4: memref<1x8x1024xf32, #tpu.memory_space<vmem>>) attributes {dimension_semantics = [#tpu.dimension_semantics<parallel>], iteration_bounds = array<i64: 2>, scalar_prefetch = 0 : i64, scratch_operands = 0 : i64, tpu.core_type = #tpu.core_type<tc>, window_params = [{transform_indices = @transform_0, window_bounds = array<i64: 1, 4, 256>}, {pipeline_mode = #tpu.pipeline_mode<synchronous>, transform_indices = @transform_1, window_bounds = array<i64: 8, 4>}, {pipeline_mode = #tpu.pipeline_mode<synchronous>, transform_indices = @transform_2, window_bounds = array<i64: 256, 1024>}, {transform_indices = @transform_3, window_bounds = array<i64: 1, 8, 1024>}]} {
    %c0 = arith.constant 0 : index
    %c0_0 = arith.constant 0 : index
    %c0_1 = arith.constant 0 : index
    %0 = vector.load %arg1[%c0, %c0_0, %c0_1] : memref<1x4x256xf32, #tpu.memory_space<vmem>>, vector<1x4x256xf32>
    %1 = vector.shape_cast %0 : vector<1x4x256xf32> to vector<4x256xf32>
    %cst = arith.constant 0.000000e+00 : f32
    %2 = vector.broadcast %cst : f32 to vector<4x256xf32>
    %3 = arith.maximumf %1, %2 : vector<4x256xf32>
    %c0_2 = arith.constant 0 : index
    %c0_3 = arith.constant 0 : index
    %4 = vector.load %arg3[%c0_2, %c0_3] : memref<256x1024xf32, #tpu.memory_space<vmem>>, vector<256x1024xf32>
    %cst_4 = arith.constant dense<0.000000e+00> : vector<4x1024xf32>
    %5 = tpu.matmul %3, %4, %cst_4 {dimension_numbers = #tpu.dot_dimension_numbers<[1], [0], [0], [1], [0, 0, 1, 1], [], []>} : vector<4x256xf32>, vector<256x1024xf32>, vector<4x1024xf32> -> vector<4x1024xf32>
    %c0_5 = arith.constant 0 : index
    %c0_6 = arith.constant 0 : index
    %6 = vector.load %arg2[%c0_5, %c0_6] : memref<8x4xf32, #tpu.memory_space<vmem>>, vector<8x4xf32>
    %cst_7 = arith.constant dense<0.000000e+00> : vector<8x1024xf32>
    %7 = tpu.matmul %6, %5, %cst_7 {dimension_numbers = #tpu.dot_dimension_numbers<[1], [0], [0], [1], [0, 0, 1, 1], [], []>} : vector<8x4xf32>, vector<4x1024xf32>, vector<8x1024xf32> -> vector<8x1024xf32>
    %c0_8 = arith.constant 0 : index
    %c0_9 = arith.constant 0 : index
    %c0_10 = arith.constant 0 : index
    %8 = vector.load %arg4[%c0_8, %c0_9, %c0_10] : memref<1x8x1024xf32, #tpu.memory_space<vmem>>, vector<1x8x1024xf32>
    %9 = vector.shape_cast %8 : vector<1x8x1024xf32> to vector<8x1024xf32>
    %10 = vector.shape_cast %7 : vector<8x1024xf32> to vector<1x8x1024xf32>
    tpu.vector_store %arg4[%c0_8, %c0_9, %c0_10], %10 {strides = array<i32>} : memref<1x8x1024xf32, #tpu.memory_space<vmem>>, vector<1x8x1024xf32>,
    return
  }
  func.func @transform_0(%arg0: i32) -> (i32, i32, i32) {
    %c0_i32 = arith.constant 0 : i32
    %c0_i32_0 = arith.constant 0 : i32
    %c0_i32_1 = arith.constant 0 : i32
    return %arg0, %c0_i32, %c0_i32_0 : i32, i32, i32
  }
  func.func @transform_1(%arg0: i32) -> (i32, i32) {
    %c0_i32 = arith.constant 0 : i32
    %c0_i32_0 = arith.constant 0 : i32
    %c0_i32_1 = arith.constant 0 : i32
    return %c0_i32, %c0_i32_0 : i32, i32
  }
  func.func @transform_2(%arg0: i32) -> (i32, i32) {
    %c0_i32 = arith.constant 0 : i32
    %c0_i32_0 = arith.constant 0 : i32
    %c0_i32_1 = arith.constant 0 : i32
    return %c0_i32, %c0_i32_0 : i32, i32
  }
  func.func @transform_3(%arg0: i32) -> (i32, i32, i32) {
    %c0_i32 = arith.constant 0 : i32
    %c0_i32_0 = arith.constant 0 : i32
    %c0_i32_1 = arith.constant 0 : i32
    return %arg0, %c0_i32, %c0_i32_0 : i32, i32, i32
  }
}

</mosaic_0001>

<llo_original>
// kernel: tpu_custom_call.1
$region0: #{tpu_custom_call.1}
  #allocation0 [shape = 'u32[]', space=smem, size = 0x4, offset = 0x4, fixed_abs, tag = 'smem constant byte address 0x4 - core index']
  #allocation1 [shape = 'u32[144,128]{1,0:T(1,128)}', space=vmem, size = 0x12000, scoped, tag = 'internal scratch']
  %s0 = inlined_call_operand.hbm [shape: f32[2,4,256], index: 0, kind: input, shape index: {}]
  %s1 = inlined_call_operand.vmem [shape: f32[8,4], index: 1, kind: input, shape index: {}]
  %s2 = inlined_call_operand.hbm [shape: f32[256,1024], index: 2, kind: input, shape index: {}]
  %s3 = inlined_call_operand.hbm [shape: f32[2,8,1024], index: 3, kind: output, shape index: {}]
  %s4 = sld [smem:[#allocation0]]
  $region53: #{tpu_custom_call.1} parent=0
    _
  %s6 = ssub.s32 1, %s4
  %s7 = scalar_select 0, %s6, %s4
  $region1: #{tpu_custom_call.1} parent=0
    #allocation2 [shape = 'u8[8192]{0}', space=vmem, size = 0x2000, scoped, tag = 'input window, operand 0']
    #allocation3 [shape = 's32[2]{0}', space=sflag, size = 0x8, scoped, tag = 'scoped memory for tpu_custom_call.1']
    #allocation4 [shape = 's32[2]{0}', space=sflag, size = 0x8, scoped, tag = 'scoped memory for tpu_custom_call.1']
    #allocation5 [shape = 'u8[1048576]{0}', space=vmem, size = 0x100000, scoped, tag = 'input window, operand 2, single buffered']
    #allocation6 [shape = 's32[1]{0}', space=sflag, size = 0x4, scoped, tag = 'scoped memory for tpu_custom_call.1']
    #allocation7 [shape = 'u8[65536]{0}', space=vmem, size = 0x10000, scoped, tag = 'output window, operand 0']
    %8 = vsyncpa [#allocation3], 0
    %s9 = scalar_lea.sflag [#allocation3], 1
    %10 = vsyncpa %s9, 0
    %11 = vsyncpa [#allocation6], 0
    %12 = vsyncpa [#allocation4], 0
    %s13 = scalar_lea.sflag [#allocation4], 1
    %14 = vsyncpa %s13, 0
    loop: start=0, step=1, limit=4
    $region2: #{tpu_custom_call.1} parent=1 // loop_pre_header
      _
    $region3: #{tpu_custom_call.1} parent=1 // loop_header
      %s16 = sphi 0, %s20
      %p17 = scmp.ge.s32.totalorder %s16, 4
      %s26 = sphi 0, %s28
      %s29 = sphi 0, %s26
      %s30 = sphi 0, %s29
      %s46 = sphi 0, %s30
      %s50 = sphi 0, %s50
      %s52 = sphi 0, %s50
      %s53 = sphi 0, %s52
      %s67 = sphi 0, %s53
      %s71 = sphi 0, %s71
      %s73 = sphi 0, %s71
      %s74 = sphi 0, %s73
      %s88 = sphi 0, %s74
      %s94 = sphi 0, %s96
      %s97 = sphi 0, %s94
      %s98 = sphi 0, %s97
      %s114 = sphi 0, %s98
    $region4: #{tpu_custom_call.1} parent=1 // loop_header_branch
      %19 = sbr.rel (%p17) target = $region8
    $region5: #{tpu_custom_call.1} parent=1 // loop_body
      %s21 = ssub.s32 %s16, 1
      %s22 = ssub.s32 %s16, 2
      %s23 = sadd.s32 %s16, 1
      %s24 = ssub.s32 %s16, %s23
      %p25 = scmp.eq.s32.totalorder %s24, 0
      %s27 = sadd.s32 %s26, 1
      %s28 = scalar_select %p25, %s26, %s27
      %p31 = pneg %p25
      %p32 = scmp.eq.s32.totalorder %s16, 1
      %p33 = por %p31, %p32
      %p34 = scmp.ne.s32.totalorder %s26, %s29
      %p35 = scmp.eq.s32.totalorder %s16, 0
      %p36 = por %p34, %p35
      %p37 = scmp.ne.s32.totalorder %s26, %s29
      %p38 = scmp.eq.s32.totalorder %s21, 1
      %p39 = por %p37, %p38
      %p40 = scmp.ne.s32.totalorder %s29, %s30
      %p41 = scmp.eq.s32.totalorder %s21, 0
      %p42 = por %p40, %p41
      %p43 = scmp.ne.s32.totalorder %s29, %s30
      %p44 = scmp.eq.s32.totalorder %s22, 1
      %p45 = por %p43, %p44
      %p47 = scmp.ne.s32.totalorder %s30, %s46
      %p48 = scmp.eq.s32.totalorder %s22, 0
      %p49 = por %p47, %p48
      %s51 = sadd.s32 %s50, 1
      %p54 = scmp.eq.s32.totalorder %s16, 1
      %p55 = scmp.ne.s32.totalorder %s50, %s52
      %p56 = scmp.eq.s32.totalorder %s16, 0
      %p57 = por %p55, %p56
      %p58 = scmp.ne.s32.totalorder %s50, %s52
      %p59 = scmp.eq.s32.totalorder %s21, 1
      %p60 = por %p58, %p59
      %p61 = scmp.ne.s32.totalorder %s52, %s53
      %p62 = scmp.eq.s32.totalorder %s21, 0
      %p63 = por %p61, %p62
      %p64 = scmp.ne.s32.totalorder %s52, %s53
      %p65 = scmp.eq.s32.totalorder %s22, 1
      %p66 = por %p64, %p65
      %p68 = scmp.ne.s32.totalorder %s53, %s67
      %p69 = scmp.eq.s32.totalorder %s22, 0
      %p70 = por %p68, %p69
      %s72 = sadd.s32 %s71, 1
      %p75 = scmp.eq.s32.totalorder %s16, 1
      %p76 = scmp.ne.s32.totalorder %s71, %s73
      %p77 = scmp.eq.s32.totalorder %s16, 0
      %p78 = por %p76, %p77
      %p79 = scmp.ne.s32.totalorder %s71, %s73
      %p80 = scmp.eq.s32.totalorder %s21, 1
      %p81 = por %p79, %p80
      %p82 = scmp.ne.s32.totalorder %s73, %s74
      %p83 = scmp.eq.s32.totalorder %s21, 0
      %p84 = por %p82, %p83
      %p85 = scmp.ne.s32.totalorder %s73, %s74
      %p86 = scmp.eq.s32.totalorder %s22, 1
      %p87 = por %p85, %p86
      %p89 = scmp.ne.s32.totalorder %s74, %s88
      %p90 = scmp.eq.s32.totalorder %s22, 0
      %p91 = por %p89, %p90
      %s92 = ssub.s32 %s16, %s23
      %p93 = scmp.eq.s32.totalorder %s92, 0
      %s95 = sadd.s32 %s94, 1
      %s96 = scalar_select %p93, %s94, %s95
      %p99 = pneg %p93
      %p100 = scmp.eq.s32.totalorder %s16, 1
      %p101 = por %p99, %p100
      %p102 = scmp.ne.s32.totalorder %s94, %s97
      %p103 = scmp.eq.s32.totalorder %s16, 0
      %p104 = por %p102, %p103
      %p105 = scmp.ne.s32.totalorder %s94, %s97
      %p106 = scmp.eq.s32.totalorder %s21, 1
      %p107 = por %p105, %p106
      %p108 = scmp.ne.s32.totalorder %s97, %s98
      %p109 = scmp.eq.s32.totalorder %s21, 0
      %p110 = por %p108, %p109
      %p111 = scmp.ne.s32.totalorder %s97, %s98
      %p112 = scmp.eq.s32.totalorder %s22, 1
      %p113 = por %p111, %p112
      %p115 = scmp.ne.s32.totalorder %s98, %s114
      %p116 = scmp.eq.s32.totalorder %s22, 0
      %p117 = por %p115, %p116
      %p118 = scmp.le.s32.totalorder 1, %s16
      %p119 = scmp.lt.s32.totalorder %s16, 3
      %p120 = pnand %p118, %p119
      %p121 = pneg %p120
      // Predicated region
      $region9: #{tpu_custom_call.1} parent=5 // pred_check
        _
      $region10: #{tpu_custom_call.1} parent=5 // pred_check_branch
        %123 = sbr.rel (%p120) target = $region12
      $region11: #{tpu_custom_call.1} parent=5 // pred_region
        %s124 = ssub.s32 %s16, 1
        // Predicated region
        $region13: #{tpu_custom_call.1} parent=11 // pred_check
          %p125 = pneg %p63
        $region14: #{tpu_custom_call.1} parent=11 // pred_check_branch
          %127 = sbr.rel (%p125) target = $region16
        $region15: #{tpu_custom_call.1} parent=11 // pred_region
          _
        $region16: #{tpu_custom_call.1} parent=11 // pred_fallthru
          _
        // Predicated region
        $region17: #{tpu_custom_call.1} parent=11 // pred_check
          %p128 = pneg %p84
        $region18: #{tpu_custom_call.1} parent=11 // pred_check_branch
          %130 = sbr.rel (%p128) target = $region20
        $region19: #{tpu_custom_call.1} parent=11 // pred_region
          %s132 = ssub.s32 32768, 32768
          %133 = vsyncadd [#allocation6], %s132
          %s134 = sshll.u32 [#allocation5], 4
          %s135 = int_to_ptr.vmem [resolvable:$true] %s134
          %140 = dma.hbm_to_vmem [thread:$0]  %s2, 32768, %s135, [#allocation6], 1024, 1024, 64
        $region20: #{tpu_custom_call.1} parent=11 // pred_fallthru
          _
      $region12: #{tpu_custom_call.1} parent=5 // pred_fallthru
        _
      %p141 = scmp.lt.s32.totalorder %s16, 2
      // Predicated region
      $region21: #{tpu_custom_call.1} parent=5 // pred_check
        %p142 = pneg %p141
      $region22: #{tpu_custom_call.1} parent=5 // pred_check_branch
        %144 = sbr.rel (%p142) target = $region24
      $region23: #{tpu_custom_call.1} parent=5 // pred_region
        // Predicated region
        $region25: #{tpu_custom_call.1} parent=23 // pred_check
          %p145 = pneg %p36
        $region26: #{tpu_custom_call.1} parent=23 // pred_check_branch
          %147 = sbr.rel (%p145) target = $region28
        $region27: #{tpu_custom_call.1} parent=23 // pred_region
          %s148 = sand.u32 %s26, 1
          %s149 = scalar_lea.sflag [#allocation3], %s148
          %s150 = sand.u32 %s26, 1
          %s151 = smul.addr %s150, 8
          %s152 = scalar_lea.vmem [#allocation2], %s151
          %s154 = ssub.s32 128, 128
          %155 = vsyncadd %s149, %s154
          %s156 = smul.addr %s16, 2
          %s157 = smul.addr %s156, 64
          %s158 = scalar_lea.hbm %s0, %s157
          %s160 = sshll.u32 %s152, 4
          %s161 = int_to_ptr.vmem [resolvable:$true] %s160
          %163 = dma.hbm_to_vmem [thread:$0]  %s158, 128, %s161, %s149
        $region28: #{tpu_custom_call.1} parent=23 // pred_fallthru
          _
      $region24: #{tpu_custom_call.1} parent=5 // pred_fallthru
        _
      %p164 = scmp.le.s32.totalorder 1, %s16
      %p165 = scmp.lt.s32.totalorder %s16, 3
      %p166 = pnand %p164, %p165
      %p167 = pneg %p166
      // Predicated region
      $region29: #{tpu_custom_call.1} parent=5 // pred_check
        _
      $region30: #{tpu_custom_call.1} parent=5 // pred_check_branch
        %169 = sbr.rel (%p166) target = $region32
      $region31: #{tpu_custom_call.1} parent=5 // pred_region
        %s170 = ssub.s32 %s16, 1
        %s171 = sand.u32 %s29, 1
        %s172 = scalar_lea.sflag [#allocation3], %s171
        %s173 = sand.u32 %s29, 1
        %s174 = smul.addr %s173, 8
        %s175 = scalar_lea.vmem [#allocation2], %s174
        // Predicated region
        $region33: #{tpu_custom_call.1} parent=31 // pred_check
          %p176 = pneg %p42
        $region34: #{tpu_custom_call.1} parent=31 // pred_check_branch
          %178 = sbr.rel (%p176) target = $region36
        $region35: #{tpu_custom_call.1} parent=31 // pred_region
          %179 = dma.done %s172, 128
        $region36: #{tpu_custom_call.1} parent=31 // pred_fallthru
          _
        // Predicated region
        $region37: #{tpu_custom_call.1} parent=31 // pred_check
          %p180 = pneg %p84
        $region38: #{tpu_custom_call.1} parent=31 // pred_check_branch
          %182 = sbr.rel (%p180) target = $region40
        $region39: #{tpu_custom_call.1} parent=31 // pred_region
          %183 = dma.done [#allocation6], 32768
        $region40: #{tpu_custom_call.1} parent=31 // pred_fallthru
          _
        %s184 = sand.u32 %s29, 1
        %s185 = scalar_lea.sflag [#allocation3], %s184
        %s186 = sand.u32 %s29, 1
        %s187 = smul.addr %s186, 8
        %s188 = scalar_lea.vmem [#allocation2], %s187
        %p189 = pneg %p42
        %p190 = pneg %p39
        %p191 = pneg %p63
        %p192 = pneg %p60
        %p193 = pneg %p84
        %p194 = pneg %p81
        %p195 = pneg %p110
        %p196 = pneg %p107
        %s197 = sand.u32 %s97, 1
        %s198 = scalar_lea.sflag [#allocation4], %s197
        %s199 = sand.u32 %s97, 1
        %s200 = smul.addr %s199, 64
        %s201 = scalar_lea.vmem [#allocation7], %s200
        %v202 = vld [vmem:[%s175] sm:$0xff]
        %v203 = vmax.f32 %v202, 0.0
        %v204 = vld [vmem:[#allocation5] sm:$0xff]
        %v205 = vld [vmem:[#allocation5 + $0x8] sm:$0xff]
        %v206 = vld [vmem:[#allocation5 + $0x10] sm:$0xff]
        %v207 = vld [vmem:[#allocation5 + $0x18] sm:$0xff]
        %v208 = vld [vmem:[#allocation5 + $0x20] sm:$0xff]
        %v209 = vld [vmem:[#allocation5 + $0x28] sm:$0xff]
        %v210 = vld [vmem:[#allocation5 + $0x30] sm:$0xff]
        %v211 = vld [vmem:[#allocation5 + $0x38] sm:$0xff]
        %v212 = vld [vmem:[#allocation5 + $0x40] sm:$0xff]
        %v213 = vld [vmem:[#allocation5 + $0x48] sm:$0xff]
        %v214 = vld [vmem:[#allocation5 + $0x50] sm:$0xff]
        %v215 = vld [vmem:[#allocation5 + $0x58] sm:$0xff]
        %v216 = vld [vmem:[#allocation5 + $0x60] sm:$0xff]
        %v217 = vld [vmem:[#allocation5 + $0x68] sm:$0xff]
        %v218 = vld [vmem:[#allocation5 + $0x70] sm:$0xff]
        %v219 = vld [vmem:[#allocation5 + $0x78] sm:$0xff]
        %v220 = vld [vmem:[#allocation5 + $0x80] sm:$0xff]
        %v221 = vld [vmem:[#allocation5 + $0x88] sm:$0xff]
        %v222 = vld [vmem:[#allocation5 + $0x90] sm:$0xff]
        %v223 = vld [vmem:[#allocation5 + $0x98] sm:$0xff]
        %v224 = vld [vmem:[#allocation5 + $0xa0] sm:$0xff]
        %v225 = vld [vmem:[#allocation5 + $0xa8] sm:$0xff]
        %v226 = vld [vmem:[#allocation5 + $0xb0] sm:$0xff]
        %v227 = vld [vmem:[#allocation5 + $0xb8] sm:$0xff]
        %v228 = vld [vmem:[#allocation5 + $0xc0] sm:$0xff]
        %v229 = vld [vmem:[#allocation5 + $0xc8] sm:$0xff]
        %v230 = vld [vmem:[#allocation5 + $0xd0] sm:$0xff]
        %v231 = vld [vmem:[#allocation5 + $0xd8] sm:$0xff]
        %v232 = vld [vmem:[#allocation5 + $0xe0] sm:$0xff]
        %v233 = vld [vmem:[#allocation5 + $0xe8] sm:$0xff]
        %v234 = vld [vmem:[#allocation5 + $0xf0] sm:$0xff]
        %v235 = vld [vmem:[#allocation5 + $0xf8] sm:$0xff]
        %v236 = vld [vmem:[#allocation5 + $0x100] sm:$0xff]
        %v237 = vld [vmem:[#allocation5 + $0x108] sm:$0xff]
        %v238 = vld [vmem:[#allocation5 + $0x110] sm:$0xff]
        %v239 = vld [vmem:[#allocation5 + $0x118] sm:$0xff]
        %v240 = vld [vmem:[#allocation5 + $0x120] sm:$0xff]
        %v241 = vld [vmem:[#allocation5 + $0x128] sm:$0xff]
        %v242 = vld [vmem:[#allocation5 + $0x130] sm:$0xff]
        %v243 = vld [vmem:[#allocation5 + $0x138] sm:$0xff]
        %v244 = vld [vmem:[#allocation5 + $0x140] sm:$0xff]
        %v245 = vld [vmem:[#allocation5 + $0x148] sm:$0xff]
        %v246 = vld [vmem:[#allocation5 + $0x150] sm:$0xff]
        %v247 = vld [vmem:[#allocation5 + $0x158] sm:$0xff]
        %v248 = vld [vmem:[#allocation5 + $0x160] sm:$0xff]
        %v249 = vld [vmem:[#allocation5 + $0x168] sm:$0xff]
        %v250 = vld [vmem:[#allocation5 + $0x170] sm:$0xff]
        %v251 = vld [vmem:[#allocation5 + $0x178] sm:$0xff]
        %v252 = vld [vmem:[#allocation5 + $0x180] sm:$0xff]
        %v253 = vld [vmem:[#allocation5 + $0x188] sm:$0xff]
        %v254 = vld [vmem:[#allocation5 + $0x190] sm:$0xff]
        %v255 = vld [vmem:[#allocation5 + $0x198] sm:$0xff]
        %v256 = vld [vmem:[#allocation5 + $0x1a0] sm:$0xff]
        %v257 = vld [vmem:[#allocation5 + $0x1a8] sm:$0xff]
        %v258 = vld [vmem:[#allocation5 + $0x1b0] sm:$0xff]
        %v259 = vld [vmem:[#allocation5 + $0x1b8] sm:$0xff]
        %v260 = vld [vmem:[#allocation5 + $0x1c0] sm:$0xff]
        %v261 = vld [vmem:[#allocation5 + $0x1c8] sm:$0xff]
        %v262 = vld [vmem:[#allocation5 + $0x1d0] sm:$0xff]
        %v263 = vld [vmem:[#allocation5 + $0x1d8] sm:$0xff]
        %v264 = vld [vmem:[#allocation5 + $0x1e0] sm:$0xff]
        %v265 = vld [vmem:[#allocation5 + $0x1e8] sm:$0xff]
        %v266 = vld [vmem:[#allocation5 + $0x1f0] sm:$0xff]
        %v267 = vld [vmem:[#allocation5 + $0x1f8] sm:$0xff]
        %v268 = vld [vmem:[#allocation5 + $0x200] sm:$0xff]
        %v269 = vld [vmem:[#allocation5 + $0x208] sm:$0xff]
        %v270 = vld [vmem:[#allocation5 + $0x210] sm:$0xff]
        %v271 = vld [vmem:[#allocation5 + $0x218] sm:$0xff]
        %v272 = vld [vmem:[#allocation5 + $0x220] sm:$0xff]
        %v273 = vld [vmem:[#allocation5 + $0x228] sm:$0xff]
        %v274 = vld [vmem:[#allocation5 + $0x230] sm:$0xff]
        %v275 = vld [vmem:[#allocation5 + $0x238] sm:$0xff]
        %v276 = vld [vmem:[#allocation5 + $0x240] sm:$0xff]
        %v277 = vld [vmem:[#allocation5 + $0x248] sm:$0xff]
        %v278 = vld [vmem:[#allocation5 + $0x250] sm:$0xff]
        %v279 = vld [vmem:[#allocation5 + $0x258] sm:$0xff]
        %v280 = vld [vmem:[#allocation5 + $0x260] sm:$0xff]
        %v281 = vld [vmem:[#allocation5 + $0x268] sm:$0xff]
        %v282 = vld [vmem:[#allocation5 + $0x270] sm:$0xff]
        %v283 = vld [vmem:[#allocation5 + $0x278] sm:$0xff]
        %v284 = vld [vmem:[#allocation5 + $0x280] sm:$0xff]
        %v285 = vld [vmem:[#allocation5 + $0x288] sm:$0xff]
        %v286 = vld [vmem:[#allocation5 + $0x290] sm:$0xff]
        %v287 = vld [vmem:[#allocation5 + $0x298] sm:$0xff]
        %v288 = vld [vmem:[#allocation5 + $0x2a0] sm:$0xff]
        %v289 = vld [vmem:[#allocation5 + $0x2a8] sm:$0xff]
        %v290 = vld [vmem:[#allocation5 + $0x2b0] sm:$0xff]
        %v291 = vld [vmem:[#allocation5 + $0x2b8] sm:$0xff]
        %v292 = vld [vmem:[#allocation5 + $0x2c0] sm:$0xff]
        %v293 = vld [vmem:[#allocation5 + $0x2c8] sm:$0xff]
        %v294 = vld [vmem:[#allocation5 + $0x2d0] sm:$0xff]
        %v295 = vld [vmem:[#allocation5 + $0x2d8] sm:$0xff]
        %v296 = vld [vmem:[#allocation5 + $0x2e0] sm:$0xff]
        %v297 = vld [vmem:[#allocation5 + $0x2e8] sm:$0xff]
        %v298 = vld [vmem:[#allocation5 + $0x2f0] sm:$0xff]
        %v299 = vld [vmem:[#allocation5 + $0x2f8] sm:$0xff]
        %v300 = vld [vmem:[#allocation5 + $0x300] sm:$0xff]
        %v301 = vld [vmem:[#allocation5 + $0x308] sm:$0xff]
        %v302 = vld [vmem:[#allocation5 + $0x310] sm:$0xff]
        %v303 = vld [vmem:[#allocation5 + $0x318] sm:$0xff]
        %v304 = vld [vmem:[#allocation5 + $0x320] sm:$0xff]
        %v305 = vld [vmem:[#allocation5 + $0x328] sm:$0xff]
        %v306 = vld [vmem:[#allocation5 + $0x330] sm:$0xff]
        %v307 = vld [vmem:[#allocation5 + $0x338] sm:$0xff]
        %v308 = vld [vmem:[#allocation5 + $0x340] sm:$0xff]
        %v309 = vld [vmem:[#allocation5 + $0x348] sm:$0xff]
        %v310 = vld [vmem:[#allocation5 + $0x350] sm:$0xff]
        %v311 = vld [vmem:[#allocation5 + $0x358] sm:$0xff]
        %v312 = vld [vmem:[#allocation5 + $0x360] sm:$0xff]
        %v313 = vld [vmem:[#allocation5 + $0x368] sm:$0xff]
        %v314 = vld [vmem:[#allocation5 + $0x370] sm:$0xff]
        %v315 = vld [vmem:[#allocation5 + $0x378] sm:$0xff]
        %v316 = vld [vmem:[#allocation5 + $0x380] sm:$0xff]
        %v317 = vld [vmem:[#allocation5 + $0x388] sm:$0xff]
        %v318 = vld [vmem:[#allocation5 + $0x390] sm:$0xff]
        %v319 = vld [vmem:[#allocation5 + $0x398] sm:$0xff]
        %v320 = vld [vmem:[#allocation5 + $0x3a0] sm:$0xff]
        %v321 = vld [vmem:[#allocation5 + $0x3a8] sm:$0xff]
        %v322 = vld [vmem:[#allocation5 + $0x3b0] sm:$0xff]
        %v323 = vld [vmem:[#allocation5 + $0x3b8] sm:$0xff]
        %v324 = vld [vmem:[#allocation5 + $0x3c0] sm:$0xff]
        %v325 = vld [vmem:[#allocation5 + $0x3c8] sm:$0xff]
        %v326 = vld [vmem:[#allocation5 + $0x3d0] sm:$0xff]
        %v327 = vld [vmem:[#allocation5 + $0x3d8] sm:$0xff]
        %v328 = vld [vmem:[#allocation5 + $0x3e0] sm:$0xff]
        %v329 = vld [vmem:[#allocation5 + $0x3e8] sm:$0xff]
        %v330 = vld [vmem:[#allocation5 + $0x3f0] sm:$0xff]
        %v331 = vld [vmem:[#allocation5 + $0x3f8] sm:$0xff]
        %v332 = vld [vmem:[#allocation5 + $0x400] sm:$0xff]
        %v333 = vld [vmem:[#allocation5 + $0x408] sm:$0xff]
        %v334 = vld [vmem:[#allocation5 + $0x410] sm:$0xff]
        %v335 = vld [vmem:[#allocation5 + $0x418] sm:$0xff]
        %v336 = vld [vmem:[#allocation5 + $0x420] sm:$0xff]
        %v337 = vld [vmem:[#allocation5 + $0x428] sm:$0xff]
        %v338 = vld [vmem:[#allocation5 + $0x430] sm:$0xff]
        %v339 = vld [vmem:[#allocation5 + $0x438] sm:$0xff]
        %v340 = vld [vmem:[#allocation5 + $0x440] sm:$0xff]
        %v341 = vld [vmem:[#allocation5 + $0x448] sm:$0xff]
        %v342 = vld [vmem:[#allocation5 + $0x450] sm:$0xff]
        %v343 = vld [vmem:[#allocation5 + $0x458] sm:$0xff]
        %v344 = vld [vmem:[#allocation5 + $0x460] sm:$0xff]
        %v345 = vld [vmem:[#allocation5 + $0x468] sm:$0xff]
        %v346 = vld [vmem:[#allocation5 + $0x470] sm:$0xff]
        %v347 = vld [vmem:[#allocation5 + $0x478] sm:$0xff]
        %v348 = vld [vmem:[#allocation5 + $0x480] sm:$0xff]
        %v349 = vld [vmem:[#allocation5 + $0x488] sm:$0xff]
        %v350 = vld [vmem:[#allocation5 + $0x490] sm:$0xff]
        %v351 = vld [vmem:[#allocation5 + $0x498] sm:$0xff]
        %v352 = vld [vmem:[#allocation5 + $0x4a0] sm:$0xff]
        %v353 = vld [vmem:[#allocation5 + $0x4a8] sm:$0xff]
        %v354 = vld [vmem:[#allocation5 + $0x4b0] sm:$0xff]
        %v355 = vld [vmem:[#allocation5 + $0x4b8] sm:$0xff]
        %v356 = vld [vmem:[#allocation5 + $0x4c0] sm:$0xff]
        %v357 = vld [vmem:[#allocation5 + $0x4c8] sm:$0xff]
        %v358 = vld [vmem:[#allocation5 + $0x4d0] sm:$0xff]
        %v359 = vld [vmem:[#allocation5 + $0x4d8] sm:$0xff]
        %v360 = vld [vmem:[#allocation5 + $0x4e0] sm:$0xff]
        %v361 = vld [vmem:[#allocation5 + $0x4e8] sm:$0xff]
        %v362 = vld [vmem:[#allocation5 + $0x4f0] sm:$0xff]
        %v363 = vld [vmem:[#allocation5 + $0x4f8] sm:$0xff]
        %v364 = vld [vmem:[#allocation5 + $0x500] sm:$0xff]
        %v365 = vld [vmem:[#allocation5 + $0x508] sm:$0xff]
        %v366 = vld [vmem:[#allocation5 + $0x510] sm:$0xff]
        %v367 = vld [vmem:[#allocation5 + $0x518] sm:$0xff]
        %v368 = vld [vmem:[#allocation5 + $0x520] sm:$0xff]
        %v369 = vld [vmem:[#allocation5 + $0x528] sm:$0xff]
        %v370 = vld [vmem:[#allocation5 + $0x530] sm:$0xff]
        %v371 = vld [vmem:[#allocation5 + $0x538] sm:$0xff]
        %v372 = vld [vmem:[#allocation5 + $0x540] sm:$0xff]
        %v373 = vld [vmem:[#allocation5 + $0x548] sm:$0xff]
        %v374 = vld [vmem:[#allocation5 + $0x550] sm:$0xff]
        %v375 = vld [vmem:[#allocation5 + $0x558] sm:$0xff]
        %v376 = vld [vmem:[#allocation5 + $0x560] sm:$0xff]
        %v377 = vld [vmem:[#allocation5 + $0x568] sm:$0xff]
        %v378 = vld [vmem:[#allocation5 + $0x570] sm:$0xff]
        %v379 = vld [vmem:[#allocation5 + $0x578] sm:$0xff]
        %v380 = vld [vmem:[#allocation5 + $0x580] sm:$0xff]
        %v381 = vld [vmem:[#allocation5 + $0x588] sm:$0xff]
        %v382 = vld [vmem:[#allocation5 + $0x590] sm:$0xff]
        %v383 = vld [vmem:[#allocation5 + $0x598] sm:$0xff]
        %v384 = vld [vmem:[#allocation5 + $0x5a0] sm:$0xff]
        %v385 = vld [vmem:[#allocation5 + $0x5a8] sm:$0xff]
        %v386 = vld [vmem:[#allocation5 + $0x5b0] sm:$0xff]
        %v387 = vld [vmem:[#allocation5 + $0x5b8] sm:$0xff]
        %v388 = vld [vmem:[#allocation5 + $0x5c0] sm:$0xff]
        %v389 = vld [vmem:[#allocation5 + $0x5c8] sm:$0xff]
        %v390 = vld [vmem:[#allocation5 + $0x5d0] sm:$0xff]
        %v391 = vld [vmem:[#allocation5 + $0x5d8] sm:$0xff]
        %v392 = vld [vmem:[#allocation5 + $0x5e0] sm:$0xff]
        %v393 = vld [vmem:[#allocation5 + $0x5e8] sm:$0xff]
        %v394 = vld [vmem:[#allocation5 + $0x5f0] sm:$0xff]
        %v395 = vld [vmem:[#allocation5 + $0x5f8] sm:$0xff]
        %v396 = vld [vmem:[#allocation5 + $0x600] sm:$0xff]
        %v397 = vld [vmem:[#allocation5 + $0x608] sm:$0xff]
        %v398 = vld [vmem:[#allocation5 + $0x610] sm:$0xff]
        %v399 = vld [vmem:[#allocation5 + $0x618] sm:$0xff]
        %v400 = vld [vmem:[#allocation5 + $0x620] sm:$0xff]
        %v401 = vld [vmem:[#allocation5 + $0x628] sm:$0xff]
        %v402 = vld [vmem:[#allocation5 + $0x630] sm:$0xff]
        %v403 = vld [vmem:[#allocation5 + $0x638] sm:$0xff]
        %v404 = vld [vmem:[#allocation5 + $0x640] sm:$0xff]
        %v405 = vld [vmem:[#allocation5 + $0x648] sm:$0xff]
        %v406 = vld [vmem:[#allocation5 + $0x650] sm:$0xff]
        %v407 = vld [vmem:[#allocation5 + $0x658] sm:$0xff]
        %v408 = vld [vmem:[#allocation5 + $0x660] sm:$0xff]
        %v409 = vld [vmem:[#allocation5 + $0x668] sm:$0xff]
        %v410 = vld [vmem:[#allocation5 + $0x670] sm:$0xff]
        %v411 = vld [vmem:[#allocation5 + $0x678] sm:$0xff]
        %v412 = vld [vmem:[#allocation5 + $0x680] sm:$0xff]
        %v413 = vld [vmem:[#allocation5 + $0x688] sm:$0xff]
        %v414 = vld [vmem:[#allocation5 + $0x690] sm:$0xff]
        %v415 = vld [vmem:[#allocation5 + $0x698] sm:$0xff]
        %v416 = vld [vmem:[#allocation5 + $0x6a0] sm:$0xff]
        %v417 = vld [vmem:[#allocation5 + $0x6a8] sm:$0xff]
        %v418 = vld [vmem:[#allocation5 + $0x6b0] sm:$0xff]
        %v419 = vld [vmem:[#allocation5 + $0x6b8] sm:$0xff]
        %v420 = vld [vmem:[#allocation5 + $0x6c0] sm:$0xff]
        %v421 = vld [vmem:[#allocation5 + $0x6c8] sm:$0xff]
        %v422 = vld [vmem:[#allocation5 + $0x6d0] sm:$0xff]
        %v423 = vld [vmem:[#allocation5 + $0x6d8] sm:$0xff]
        %v424 = vld [vmem:[#allocation5 + $0x6e0] sm:$0xff]
        %v425 = vld [vmem:[#allocation5 + $0x6e8] sm:$0xff]
        %v426 = vld [vmem:[#allocation5 + $0x6f0] sm:$0xff]
        %v427 = vld [vmem:[#allocation5 + $0x6f8] sm:$0xff]
        %v428 = vld [vmem:[#allocation5 + $0x700] sm:$0xff]
        %v429 = vld [vmem:[#allocation5 + $0x708] sm:$0xff]
        %v430 = vld [vmem:[#allocation5 + $0x710] sm:$0xff]
        %v431 = vld [vmem:[#allocation5 + $0x718] sm:$0xff]
        %v432 = vld [vmem:[#allocation5 + $0x720] sm:$0xff]
        %v433 = vld [vmem:[#allocation5 + $0x728] sm:$0xff]
        %v434 = vld [vmem:[#allocation5 + $0x730] sm:$0xff]
        %v435 = vld [vmem:[#allocation5 + $0x738] sm:$0xff]
        %v436 = vld [vmem:[#allocation5 + $0x740] sm:$0xff]
        %v437 = vld [vmem:[#allocation5 + $0x748] sm:$0xff]
        %v438 = vld [vmem:[#allocation5 + $0x750] sm:$0xff]
        %v439 = vld [vmem:[#allocation5 + $0x758] sm:$0xff]
        %v440 = vld [vmem:[#allocation5 + $0x760] sm:$0xff]
        %v441 = vld [vmem:[#allocation5 + $0x768] sm:$0xff]
        %v442 = vld [vmem:[#allocation5 + $0x770] sm:$0xff]
        %v443 = vld [vmem:[#allocation5 + $0x778] sm:$0xff]
        %v444 = vld [vmem:[#allocation5 + $0x780] sm:$0xff]
        %v445 = vld [vmem:[#allocation5 + $0x788] sm:$0xff]
        %v446 = vld [vmem:[#allocation5 + $0x790] sm:$0xff]
        %v447 = vld [vmem:[#allocation5 + $0x798] sm:$0xff]
        %v448 = vld [vmem:[#allocation5 + $0x7a0] sm:$0xff]
        %v449 = vld [vmem:[#allocation5 + $0x7a8] sm:$0xff]
        %v450 = vld [vmem:[#allocation5 + $0x7b0] sm:$0xff]
        %v451 = vld [vmem:[#allocation5 + $0x7b8] sm:$0xff]
        %v452 = vld [vmem:[#allocation5 + $0x7c0] sm:$0xff]
        %v453 = vld [vmem:[#allocation5 + $0x7c8] sm:$0xff]
        %v454 = vld [vmem:[#allocation5 + $0x7d0] sm:$0xff]
        %v455 = vld [vmem:[#allocation5 + $0x7d8] sm:$0xff]
        %v456 = vld [vmem:[#allocation5 + $0x7e0] sm:$0xff]
        %v457 = vld [vmem:[#allocation5 + $0x7e8] sm:$0xff]
        %v458 = vld [vmem:[#allocation5 + $0x7f0] sm:$0xff]
        %v459 = vld [vmem:[#allocation5 + $0x7f8] sm:$0xff]
        %v461 = vcombine.high %v203, %v203
        %463 = vmatprep.subr.mxu0 %v325
        %464 = vmatpush1.msra.mxu0 %v324
        %465 = vmatprep.subr.mxu0 %v317
        %466 = vmatpush1.msra.mxu0 %v316
        %467 = vmatprep.subr.mxu0 %v309
        %468 = vmatpush1.msra.mxu0 %v308
        %469 = vmatprep.subr.mxu0 %v301
        %470 = vmatpush1.msra.mxu0 %v300
        %471 = vmatprep.subr.mxu0 %v293
        %472 = vmatpush1.msra.mxu0 %v292
        %473 = vmatprep.subr.mxu0 %v285
        %474 = vmatpush1.msra.mxu0 %v284
        %475 = vmatprep.subr.mxu0 %v277
        %476 = vmatpush1.msra.mxu0 %v276
        %477 = vmatprep.subr.mxu0 %v269
        %478 = vmatpush1.msra.mxu0 %v268
        %479 = vmatprep.subr.mxu0 %v261
        %480 = vmatpush1.msra.mxu0 %v260
        %481 = vmatprep.subr.mxu0 %v253
        %482 = vmatpush1.msra.mxu0 %v252
        %483 = vmatprep.subr.mxu0 %v245
        %484 = vmatpush1.msra.mxu0 %v244
        %485 = vmatprep.subr.mxu0 %v237
        %486 = vmatpush1.msra.mxu0 %v236
        %487 = vmatprep.subr.mxu0 %v229
        %488 = vmatpush1.msra.mxu0 %v228
        %489 = vmatprep.subr.mxu0 %v221
        %490 = vmatpush1.msra.mxu0 %v220
        %491 = vmatprep.subr.mxu0 %v213
        %492 = vmatpush1.msra.mxu0 %v212
        %493 = vmatprep.subr.mxu0 %v205
        %494 = vmatpush1.msra.mxu0 %v204
        %495 = vmatprep.subr.mxu0 %v453
        %496 = vmatpush2.msra.mxu0 %v452
        %497 = vmatprep.subr.mxu0 %v445
        %498 = vmatpush2.msra.mxu0 %v444
        %499 = vmatprep.subr.mxu0 %v437
        %500 = vmatpush2.msra.mxu0 %v436
        %501 = vmatprep.subr.mxu0 %v429
        %502 = vmatpush2.msra.mxu0 %v428
        %503 = vmatprep.subr.mxu0 %v421
        %504 = vmatpush2.msra.mxu0 %v420
        %505 = vmatprep.subr.mxu0 %v413
        %506 = vmatpush2.msra.mxu0 %v412
        %507 = vmatprep.subr.mxu0 %v405
        %508 = vmatpush2.msra.mxu0 %v404
        %509 = vmatprep.subr.mxu0 %v397
        %510 = vmatpush2.msra.mxu0 %v396
        %511 = vmatprep.subr.mxu0 %v389
        %512 = vmatpush2.msra.mxu0 %v388
        %513 = vmatprep.subr.mxu0 %v381
        %514 = vmatpush2.msra.mxu0 %v380
        %515 = vmatprep.subr.mxu0 %v373
        %516 = vmatpush2.msra.mxu0 %v372
        %517 = vmatprep.subr.mxu0 %v365
        %518 = vmatpush2.msra.mxu0 %v364
        %519 = vmatprep.subr.mxu0 %v357
        %520 = vmatpush2.msra.mxu0 %v356
        %521 = vmatprep.subr.mxu0 %v349
        %522 = vmatpush2.msra.mxu0 %v348
        %523 = vmatprep.subr.mxu0 %v341
        %524 = vmatpush2.msra.mxu0 %v340
        %525 = vmatprep.subr.mxu0 %v333
        %526 = vmatpush2.msra.mxu0 %v332
        %527 = vmatprep.mubr.f32.mxu0 %v461
        %528 = vmatmul.mubr.f32.gmra.mxu0 %v203
        %v529 = vpop.f32.mrf.mxu0
        %v530 = vadd.f32 0.0, %v529
        %v531 = vpop.f32.mrf.mxu0
        %v532 = vadd.f32 0.0, %v531
        %533 = vdwg.mxu0
        %534 = vmatprep.subr.mxu0 %v327
        %535 = vmatpush1.msra.mxu0 %v326
        %536 = vmatprep.subr.mxu0 %v319
        %537 = vmatpush1.msra.mxu0 %v318
        %538 = vmatprep.subr.mxu0 %v311
        %539 = vmatpush1.msra.mxu0 %v310
        %540 = vmatprep.subr.mxu0 %v303
        %541 = vmatpush1.msra.mxu0 %v302
        %542 = vmatprep.subr.mxu0 %v295
        %543 = vmatpush1.msra.mxu0 %v294
        %544 = vmatprep.subr.mxu0 %v287
        %545 = vmatpush1.msra.mxu0 %v286
        %546 = vmatprep.subr.mxu0 %v279
        %547 = vmatpush1.msra.mxu0 %v278
        %548 = vmatprep.subr.mxu0 %v271
        %549 = vmatpush1.msra.mxu0 %v270
        %550 = vmatprep.subr.mxu0 %v263
        %551 = vmatpush1.msra.mxu0 %v262
        %552 = vmatprep.subr.mxu0 %v255
        %553 = vmatpush1.msra.mxu0 %v254
        %554 = vmatprep.subr.mxu0 %v247
        %555 = vmatpush1.msra.mxu0 %v246
        %556 = vmatprep.subr.mxu0 %v239
        %557 = vmatpush1.msra.mxu0 %v238
        %558 = vmatprep.subr.mxu0 %v231
        %559 = vmatpush1.msra.mxu0 %v230
        %560 = vmatprep.subr.mxu0 %v223
        %561 = vmatpush1.msra.mxu0 %v222
        %562 = vmatprep.subr.mxu0 %v215
        %563 = vmatpush1.msra.mxu0 %v214
        %564 = vmatprep.subr.mxu0 %v207
        %565 = vmatpush1.msra.mxu0 %v206
        %566 = vmatprep.subr.mxu0 %v455
        %567 = vmatpush2.msra.mxu0 %v454
        %568 = vmatprep.subr.mxu0 %v447
        %569 = vmatpush2.msra.mxu0 %v446
        %570 = vmatprep.subr.mxu0 %v439
        %571 = vmatpush2.msra.mxu0 %v438
        %572 = vmatprep.subr.mxu0 %v431
        %573 = vmatpush2.msra.mxu0 %v430
        %574 = vmatprep.subr.mxu0 %v423
        %575 = vmatpush2.msra.mxu0 %v422
        %576 = vmatprep.subr.mxu0 %v415
        %577 = vmatpush2.msra.mxu0 %v414
        %578 = vmatprep.subr.mxu0 %v407
        %579 = vmatpush2.msra.mxu0 %v406
        %580 = vmatprep.subr.mxu0 %v399
        %581 = vmatpush2.msra.mxu0 %v398
        %582 = vmatprep.subr.mxu0 %v391
        %583 = vmatpush2.msra.mxu0 %v390
        %584 = vmatprep.subr.mxu0 %v383
        %585 = vmatpush2.msra.mxu0 %v382
        %586 = vmatprep.subr.mxu0 %v375
        %587 = vmatpush2.msra.mxu0 %v374
        %588 = vmatprep.subr.mxu0 %v367
        %589 = vmatpush2.msra.mxu0 %v366
        %590 = vmatprep.subr.mxu0 %v359
        %591 = vmatpush2.msra.mxu0 %v358
        %592 = vmatprep.subr.mxu0 %v351
        %593 = vmatpush2.msra.mxu0 %v350
        %594 = vmatprep.subr.mxu0 %v343
        %595 = vmatpush2.msra.mxu0 %v342
        %596 = vmatprep.subr.mxu0 %v335
        %597 = vmatpush2.msra.mxu0 %v334
        %598 = vmatprep.mubr.f32.mxu0 %v461
        %599 = vmatmul.mubr.f32.gmra.mxu0 %v203
        %v600 = vpop.f32.mrf.mxu0
        %v601 = vadd.f32 0.0, %v600
        %v602 = vpop.f32.mrf.mxu0
        %v603 = vadd.f32 0.0, %v602
        %604 = vdwg.mxu0
        %605 = vmatprep.subr.mxu0 %v329
        %606 = vmatpush1.msra.mxu0 %v328
        %607 = vmatprep.subr.mxu0 %v321
        %608 = vmatpush1.msra.mxu0 %v320
        %609 = vmatprep.subr.mxu0 %v313
        %610 = vmatpush1.msra.mxu0 %v312
        %611 = vmatprep.subr.mxu0 %v305
        %612 = vmatpush1.msra.mxu0 %v304
        %613 = vmatprep.subr.mxu0 %v297
        %614 = vmatpush1.msra.mxu0 %v296
        %615 = vmatprep.subr.mxu0 %v289
        %616 = vmatpush1.msra.mxu0 %v288
        %617 = vmatprep.subr.mxu0 %v281
        %618 = vmatpush1.msra.mxu0 %v280
        %619 = vmatprep.subr.mxu0 %v273
        %620 = vmatpush1.msra.mxu0 %v272
        %621 = vmatprep.subr.mxu0 %v265
        %622 = vmatpush1.msra.mxu0 %v264
        %623 = vmatprep.subr.mxu0 %v257
        %624 = vmatpush1.msra.mxu0 %v256
        %625 = vmatprep.subr.mxu0 %v249
        %626 = vmatpush1.msra.mxu0 %v248
        %627 = vmatprep.subr.mxu0 %v241
        %628 = vmatpush1.msra.mxu0 %v240
        %629 = vmatprep.subr.mxu0 %v233
        %630 = vmatpush1.msra.mxu0 %v232
        %631 = vmatprep.subr.mxu0 %v225
        %632 = vmatpush1.msra.mxu0 %v224
        %633 = vmatprep.subr.mxu0 %v217
        %634 = vmatpush1.msra.mxu0 %v216
        %635 = vmatprep.subr.mxu0 %v209
        %636 = vmatpush1.msra.mxu0 %v208
        %637 = vmatprep.subr.mxu0 %v457
        %638 = vmatpush2.msra.mxu0 %v456
        %639 = vmatprep.subr.mxu0 %v449
        %640 = vmatpush2.msra.mxu0 %v448
        %641 = vmatprep.subr.mxu0 %v441
        %642 = vmatpush2.msra.mxu0 %v440
        %643 = vmatprep.subr.mxu0 %v433
        %644 = vmatpush2.msra.mxu0 %v432
        %645 = vmatprep.subr.mxu0 %v425
        %646 = vmatpush2.msra.mxu0 %v424
        %647 = vmatprep.subr.mxu0 %v417
        %648 = vmatpush2.msra.mxu0 %v416
        %649 = vmatprep.subr.mxu0 %v409
        %650 = vmatpush2.msra.mxu0 %v408
        %651 = vmatprep.subr.mxu0 %v401
        %652 = vmatpush2.msra.mxu0 %v400
        %653 = vmatprep.subr.mxu0 %v393
        %654 = vmatpush2.msra.mxu0 %v392
        %655 = vmatprep.subr.mxu0 %v385
        %656 = vmatpush2.msra.mxu0 %v384
        %657 = vmatprep.subr.mxu0 %v377
        %658 = vmatpush2.msra.mxu0 %v376
        %659 = vmatprep.subr.mxu0 %v369
        %660 = vmatpush2.msra.mxu0 %v368
        %661 = vmatprep.subr.mxu0 %v361
        %662 = vmatpush2.msra.mxu0 %v360
        %663 = vmatprep.subr.mxu0 %v353
        %664 = vmatpush2.msra.mxu0 %v352
        %665 = vmatprep.subr.mxu0 %v345
        %666 = vmatpush2.msra.mxu0 %v344
        %667 = vmatprep.subr.mxu0 %v337
        %668 = vmatpush2.msra.mxu0 %v336
        %669 = vmatprep.mubr.f32.mxu0 %v461
        %670 = vmatmul.mubr.f32.gmra.mxu0 %v203
        %v671 = vpop.f32.mrf.mxu0
        %v672 = vadd.f32 0.0, %v671
        %v673 = vpop.f32.mrf.mxu0
        %v674 = vadd.f32 0.0, %v673
        %675 = vdwg.mxu0
        %676 = vmatprep.subr.mxu0 %v331
        %677 = vmatpush1.msra.mxu0 %v330
        %678 = vmatprep.subr.mxu0 %v323
        %679 = vmatpush1.msra.mxu0 %v322
        %680 = vmatprep.subr.mxu0 %v315
        %681 = vmatpush1.msra.mxu0 %v314
        %682 = vmatprep.subr.mxu0 %v307
        %683 = vmatpush1.msra.mxu0 %v306
        %684 = vmatprep.subr.mxu0 %v299
        %685 = vmatpush1.msra.mxu0 %v298
        %686 = vmatprep.subr.mxu0 %v291
        %687 = vmatpush1.msra.mxu0 %v290
        %688 = vmatprep.subr.mxu0 %v283
        %689 = vmatpush1.msra.mxu0 %v282
        %690 = vmatprep.subr.mxu0 %v275
        %691 = vmatpush1.msra.mxu0 %v274
        %692 = vmatprep.subr.mxu0 %v267
        %693 = vmatpush1.msra.mxu0 %v266
        %694 = vmatprep.subr.mxu0 %v259
        %695 = vmatpush1.msra.mxu0 %v258
        %696 = vmatprep.subr.mxu0 %v251
        %697 = vmatpush1.msra.mxu0 %v250
        %698 = vmatprep.subr.mxu0 %v243
        %699 = vmatpush1.msra.mxu0 %v242
        %700 = vmatprep.subr.mxu0 %v235
        %701 = vmatpush1.msra.mxu0 %v234
        %702 = vmatprep.subr.mxu0 %v227
        %703 = vmatpush1.msra.mxu0 %v226
        %704 = vmatprep.subr.mxu0 %v219
        %705 = vmatpush1.msra.mxu0 %v218
        %706 = vmatprep.subr.mxu0 %v211
        %707 = vmatpush1.msra.mxu0 %v210
        %708 = vmatprep.subr.mxu0 %v459
        %709 = vmatpush2.msra.mxu0 %v458
        %710 = vmatprep.subr.mxu0 %v451
        %711 = vmatpush2.msra.mxu0 %v450
        %712 = vmatprep.subr.mxu0 %v443
        %713 = vmatpush2.msra.mxu0 %v442
        %714 = vmatprep.subr.mxu0 %v435
        %715 = vmatpush2.msra.mxu0 %v434
        %716 = vmatprep.subr.mxu0 %v427
        %717 = vmatpush2.msra.mxu0 %v426
        %718 = vmatprep.subr.mxu0 %v419
        %719 = vmatpush2.msra.mxu0 %v418
        %720 = vmatprep.subr.mxu0 %v411
        %721 = vmatpush2.msra.mxu0 %v410
        %722 = vmatprep.subr.mxu0 %v403
        %723 = vmatpush2.msra.mxu0 %v402
        %724 = vmatprep.subr.mxu0 %v395
        %725 = vmatpush2.msra.mxu0 %v394
        %726 = vmatprep.subr.mxu0 %v387
        %727 = vmatpush2.msra.mxu0 %v386
        %728 = vmatprep.subr.mxu0 %v379
        %729 = vmatpush2.msra.mxu0 %v378
        %730 = vmatprep.subr.mxu0 %v371
        %731 = vmatpush2.msra.mxu0 %v370
        %732 = vmatprep.subr.mxu0 %v363
        %733 = vmatpush2.msra.mxu0 %v362
        %734 = vmatprep.subr.mxu0 %v355
        %735 = vmatpush2.msra.mxu0 %v354
        %736 = vmatprep.subr.mxu0 %v347
        %737 = vmatpush2.msra.mxu0 %v346
        %738 = vmatprep.subr.mxu0 %v339
        %739 = vmatpush2.msra.mxu0 %v338
        %740 = vmatprep.mubr.f32.mxu0 %v461
        %741 = vmatmul.mubr.f32.gmra.mxu0 %v203
        %v742 = vpop.f32.mrf.mxu0
        %v743 = vadd.f32 0.0, %v742
        %v744 = vpop.f32.mrf.mxu0
        %v745 = vadd.f32 0.0, %v744
        %746 = vdwg.mxu0
        %v747 = vld [vmem:[%s1] sm:$0xff]
        %vm748 = vcmask 31744
        %v750 = vsel %vm748, %v747, 0
        %vm752 = vcmask 1043456
        %v754 = vsel %vm752, %v530, 0
        %v757 = vsel %vm752, %v532, 0
        %v760 = vsel %vm752, %v601, 0
        %v763 = vsel %vm752, %v603, 0
        %v766 = vsel %vm752, %v672, 0
        %v769 = vsel %vm752, %v674, 0
        %v772 = vsel %vm752, %v743, 0
        %v775 = vsel %vm752, %v745, 0
        %777 = vmatprep.subr.mxu0 0.0
        %778 = vmatpush1.msra.mxu0 0.0
        %779 = vmatprep.subr.mxu0 0.0
        %780 = vmatpush1.msra.mxu0 0.0
        %781 = vmatprep.subr.mxu0 0.0
        %782 = vmatpush1.msra.mxu0 0.0
        %783 = vmatprep.subr.mxu0 0.0
        %784 = vmatpush1.msra.mxu0 0.0
        %785 = vmatprep.subr.mxu0 0.0
        %786 = vmatpush1.msra.mxu0 0.0
        %787 = vmatprep.subr.mxu0 0.0
        %788 = vmatpush1.msra.mxu0 0.0
        %789 = vmatprep.subr.mxu0 0.0
        %790 = vmatpush1.msra.mxu0 0.0
        %791 = vmatprep.subr.mxu0 0.0
        %792 = vmatpush1.msra.mxu0 0.0
        %793 = vmatprep.subr.mxu0 0.0
        %794 = vmatpush1.msra.mxu0 0.0
        %795 = vmatprep.subr.mxu0 0.0
        %796 = vmatpush1.msra.mxu0 0.0
        %797 = vmatprep.subr.mxu0 0.0
        %798 = vmatpush1.msra.mxu0 0.0
        %799 = vmatprep.subr.mxu0 0.0
        %800 = vmatpush1.msra.mxu0 0.0
        %801 = vmatprep.subr.mxu0 0.0
        %802 = vmatpush1.msra.mxu0 0.0
        %803 = vmatprep.subr.mxu0 0.0
        %804 = vmatpush1.msra.mxu0 0.0
        %805 = vmatprep.subr.mxu0 0.0
        %806 = vmatpush1.msra.mxu0 0.0
        %807 = vmatprep.subr.mxu0 %v757
        %808 = vmatpush1.msra.mxu0 %v754
        %809 = vmatprep.subr.mxu0 0.0
        %810 = vmatpush2.msra.mxu0 0.0
        %811 = vmatprep.subr.mxu0 0.0
        %812 = vmatpush2.msra.mxu0 0.0
        %813 = vmatprep.subr.mxu0 0.0
        %814 = vmatpush2.msra.mxu0 0.0
        %815 = vmatprep.subr.mxu0 0.0
        %816 = vmatpush2.msra.mxu0 0.0
        %817 = vmatprep.subr.mxu0 0.0
        %818 = vmatpush2.msra.mxu0 0.0
        %819 = vmatprep.subr.mxu0 0.0
        %820 = vmatpush2.msra.mxu0 0.0
        %821 = vmatprep.subr.mxu0 0.0
        %822 = vmatpush2.msra.mxu0 0.0
        %823 = vmatprep.subr.mxu0 0.0
        %824 = vmatpush2.msra.mxu0 0.0
        %825 = vmatprep.subr.mxu0 0.0
        %826 = vmatpush2.msra.mxu0 0.0
        %827 = vmatprep.subr.mxu0 0.0
        %828 = vmatpush2.msra.mxu0 0.0
        %829 = vmatprep.subr.mxu0 0.0
        %830 = vmatpush2.msra.mxu0 0.0
        %831 = vmatprep.subr.mxu0 0.0
        %832 = vmatpush2.msra.mxu0 0.0
        %833 = vmatprep.subr.mxu0 0.0
        %834 = vmatpush2.msra.mxu0 0.0
        %835 = vmatprep.subr.mxu0 0.0
        %836 = vmatpush2.msra.mxu0 0.0
        %837 = vmatprep.subr.mxu0 0.0
        %838 = vmatpush2.msra.mxu0 0.0
        %839 = vmatprep.subr.mxu0 0.0
        %840 = vmatpush2.msra.mxu0 0.0
        %841 = vmatprep.mubr.f32.mxu0 0.0
        %842 = vmatmul.mubr.f32.gmra.mxu0 %v750
        %v843 = vpop.f32.mrf.mxu0
        %v844 = vadd.f32 0.0, %v843
        %v845 = vpop.f32.mrf.mxu0
        %v846 = vadd.f32 0.0, %v845
        %847 = vdwg.mxu0
        %848 = vmatprep.subr.mxu0 0.0
        %849 = vmatpush1.msra.mxu0 0.0
        %850 = vmatprep.subr.mxu0 0.0
        %851 = vmatpush1.msra.mxu0 0.0
        %852 = vmatprep.subr.mxu0 0.0
        %853 = vmatpush1.msra.mxu0 0.0
        %854 = vmatprep.subr.mxu0 0.0
        %855 = vmatpush1.msra.mxu0 0.0
        %856 = vmatprep.subr.mxu0 0.0
        %857 = vmatpush1.msra.mxu0 0.0
        %858 = vmatprep.subr.mxu0 0.0
        %859 = vmatpush1.msra.mxu0 0.0
        %860 = vmatprep.subr.mxu0 0.0
        %861 = vmatpush1.msra.mxu0 0.0
        %862 = vmatprep.subr.mxu0 0.0
        %863 = vmatpush1.msra.mxu0 0.0
        %864 = vmatprep.subr.mxu0 0.0
        %865 = vmatpush1.msra.mxu0 0.0
        %866 = vmatprep.subr.mxu0 0.0
        %867 = vmatpush1.msra.mxu0 0.0
        %868 = vmatprep.subr.mxu0 0.0
        %869 = vmatpush1.msra.mxu0 0.0
        %870 = vmatprep.subr.mxu0 0.0
        %871 = vmatpush1.msra.mxu0 0.0
        %872 = vmatprep.subr.mxu0 0.0
        %873 = vmatpush1.msra.mxu0 0.0
        %874 = vmatprep.subr.mxu0 0.0
        %875 = vmatpush1.msra.mxu0 0.0
        %876 = vmatprep.subr.mxu0 0.0
        %877 = vmatpush1.msra.mxu0 0.0
        %878 = vmatprep.subr.mxu0 %v763
        %879 = vmatpush1.msra.mxu0 %v760
        %880 = vmatprep.subr.mxu0 0.0
        %881 = vmatpush2.msra.mxu0 0.0
        %882 = vmatprep.subr.mxu0 0.0
        %883 = vmatpush2.msra.mxu0 0.0
        %884 = vmatprep.subr.mxu0 0.0
        %885 = vmatpush2.msra.mxu0 0.0
        %886 = vmatprep.subr.mxu0 0.0
        %887 = vmatpush2.msra.mxu0 0.0
        %888 = vmatprep.subr.mxu0 0.0
        %889 = vmatpush2.msra.mxu0 0.0
        %890 = vmatprep.subr.mxu0 0.0
        %891 = vmatpush2.msra.mxu0 0.0
        %892 = vmatprep.subr.mxu0 0.0
        %893 = vmatpush2.msra.mxu0 0.0
        %894 = vmatprep.subr.mxu0 0.0
        %895 = vmatpush2.msra.mxu0 0.0
        %896 = vmatprep.subr.mxu0 0.0
        %897 = vmatpush2.msra.mxu0 0.0
        %898 = vmatprep.subr.mxu0 0.0
        %899 = vmatpush2.msra.mxu0 0.0
        %900 = vmatprep.subr.mxu0 0.0
        %901 = vmatpush2.msra.mxu0 0.0
        %902 = vmatprep.subr.mxu0 0.0
        %903 = vmatpush2.msra.mxu0 0.0
        %904 = vmatprep.subr.mxu0 0.0
        %905 = vmatpush2.msra.mxu0 0.0
        %906 = vmatprep.subr.mxu0 0.0
        %907 = vmatpush2.msra.mxu0 0.0
        %908 = vmatprep.subr.mxu0 0.0
        %909 = vmatpush2.msra.mxu0 0.0
        %910 = vmatprep.subr.mxu0 0.0
        %911 = vmatpush2.msra.mxu0 0.0
        %912 = vmatprep.mubr.f32.mxu0 0.0
        %913 = vmatmul.mubr.f32.gmra.mxu0 %v750
        %v914 = vpop.f32.mrf.mxu0
        %v915 = vadd.f32 0.0, %v914
        %v916 = vpop.f32.mrf.mxu0
        %v917 = vadd.f32 0.0, %v916
        %918 = vdwg.mxu0
        %919 = vmatprep.subr.mxu0 0.0
        %920 = vmatpush1.msra.mxu0 0.0
        %921 = vmatprep.subr.mxu0 0.0
        %922 = vmatpush1.msra.mxu0 0.0
        %923 = vmatprep.subr.mxu0 0.0
        %924 = vmatpush1.msra.mxu0 0.0
        %925 = vmatprep.subr.mxu0 0.0
        %926 = vmatpush1.msra.mxu0 0.0
        %927 = vmatprep.subr.mxu0 0.0
        %928 = vmatpush1.msra.mxu0 0.0
        %929 = vmatprep.subr.mxu0 0.0
        %930 = vmatpush1.msra.mxu0 0.0
        %931 = vmatprep.subr.mxu0 0.0
        %932 = vmatpush1.msra.mxu0 0.0
        %933 = vmatprep.subr.mxu0 0.0
        %934 = vmatpush1.msra.mxu0 0.0
        %935 = vmatprep.subr.mxu0 0.0
        %936 = vmatpush1.msra.mxu0 0.0
        %937 = vmatprep.subr.mxu0 0.0
        %938 = vmatpush1.msra.mxu0 0.0
        %939 = vmatprep.subr.mxu0 0.0
        %940 = vmatpush1.msra.mxu0 0.0
        %941 = vmatprep.subr.mxu0 0.0
        %942 = vmatpush1.msra.mxu0 0.0
        %943 = vmatprep.subr.mxu0 0.0
        %944 = vmatpush1.msra.mxu0 0.0
        %945 = vmatprep.subr.mxu0 0.0
        %946 = vmatpush1.msra.mxu0 0.0
        %947 = vmatprep.subr.mxu0 0.0
        %948 = vmatpush1.msra.mxu0 0.0
        %949 = vmatprep.subr.mxu0 %v769
        %950 = vmatpush1.msra.mxu0 %v766
        %951 = vmatprep.subr.mxu0 0.0
        %952 = vmatpush2.msra.mxu0 0.0
        %953 = vmatprep.subr.mxu0 0.0
        %954 = vmatpush2.msra.mxu0 0.0
        %955 = vmatprep.subr.mxu0 0.0
        %956 = vmatpush2.msra.mxu0 0.0
        %957 = vmatprep.subr.mxu0 0.0
        %958 = vmatpush2.msra.mxu0 0.0
        %959 = vmatprep.subr.mxu0 0.0
        %960 = vmatpush2.msra.mxu0 0.0
        %961 = vmatprep.subr.mxu0 0.0
        %962 = vmatpush2.msra.mxu0 0.0
        %963 = vmatprep.subr.mxu0 0.0
        %964 = vmatpush2.msra.mxu0 0.0
        %965 = vmatprep.subr.mxu0 0.0
        %966 = vmatpush2.msra.mxu0 0.0
        %967 = vmatprep.subr.mxu0 0.0
        %968 = vmatpush2.msra.mxu0 0.0
        %969 = vmatprep.subr.mxu0 0.0
        %970 = vmatpush2.msra.mxu0 0.0
        %971 = vmatprep.subr.mxu0 0.0
        %972 = vmatpush2.msra.mxu0 0.0
        %973 = vmatprep.subr.mxu0 0.0
        %974 = vmatpush2.msra.mxu0 0.0
        %975 = vmatprep.subr.mxu0 0.0
        %976 = vmatpush2.msra.mxu0 0.0
        %977 = vmatprep.subr.mxu0 0.0
        %978 = vmatpush2.msra.mxu0 0.0
        %979 = vmatprep.subr.mxu0 0.0
        %980 = vmatpush2.msra.mxu0 0.0
        %981 = vmatprep.subr.mxu0 0.0
        %982 = vmatpush2.msra.mxu0 0.0
        %983 = vmatprep.mubr.f32.mxu0 0.0
        %984 = vmatmul.mubr.f32.gmra.mxu0 %v750
        %v985 = vpop.f32.mrf.mxu0
        %v986 = vadd.f32 0.0, %v985
        %v987 = vpop.f32.mrf.mxu0
        %v988 = vadd.f32 0.0, %v987
        %989 = vdwg.mxu0
        %990 = vmatprep.subr.mxu0 0.0
        %991 = vmatpush1.msra.mxu0 0.0
        %992 = vmatprep.subr.mxu0 0.0
        %993 = vmatpush1.msra.mxu0 0.0
        %994 = vmatprep.subr.mxu0 0.0
        %995 = vmatpush1.msra.mxu0 0.0
        %996 = vmatprep.subr.mxu0 0.0
        %997 = vmatpush1.msra.mxu0 0.0
        %998 = vmatprep.subr.mxu0 0.0
        %999 = vmatpush1.msra.mxu0 0.0
        %1000 = vmatprep.subr.mxu0 0.0
        %1001 = vmatpush1.msra.mxu0 0.0
        %1002 = vmatprep.subr.mxu0 0.0
        %1003 = vmatpush1.msra.mxu0 0.0
        %1004 = vmatprep.subr.mxu0 0.0
        %1005 = vmatpush1.msra.mxu0 0.0
        %1006 = vmatprep.subr.mxu0 0.0
        %1007 = vmatpush1.msra.mxu0 0.0
        %1008 = vmatprep.subr.mxu0 0.0
        %1009 = vmatpush1.msra.mxu0 0.0
        %1010 = vmatprep.subr.mxu0 0.0
        %1011 = vmatpush1.msra.mxu0 0.0
        %1012 = vmatprep.subr.mxu0 0.0
        %1013 = vmatpush1.msra.mxu0 0.0
        %1014 = vmatprep.subr.mxu0 0.0
        %1015 = vmatpush1.msra.mxu0 0.0
        %1016 = vmatprep.subr.mxu0 0.0
        %1017 = vmatpush1.msra.mxu0 0.0
        %1018 = vmatprep.subr.mxu0 0.0
        %1019 = vmatpush1.msra.mxu0 0.0
        %1020 = vmatprep.subr.mxu0 %v775
        %1021 = vmatpush1.msra.mxu0 %v772
        %1022 = vmatprep.subr.mxu0 0.0
        %1023 = vmatpush2.msra.mxu0 0.0
        %1024 = vmatprep.subr.mxu0 0.0
        %1025 = vmatpush2.msra.mxu0 0.0
        %1026 = vmatprep.subr.mxu0 0.0
        %1027 = vmatpush2.msra.mxu0 0.0
        %1028 = vmatprep.subr.mxu0 0.0
        %1029 = vmatpush2.msra.mxu0 0.0
        %1030 = vmatprep.subr.mxu0 0.0
        %1031 = vmatpush2.msra.mxu0 0.0
        %1032 = vmatprep.subr.mxu0 0.0
        %1033 = vmatpush2.msra.mxu0 0.0
        %1034 = vmatprep.subr.mxu0 0.0
        %1035 = vmatpush2.msra.mxu0 0.0
        %1036 = vmatprep.subr.mxu0 0.0
        %1037 = vmatpush2.msra.mxu0 0.0
        %1038 = vmatprep.subr.mxu0 0.0
        %1039 = vmatpush2.msra.mxu0 0.0
        %1040 = vmatprep.subr.mxu0 0.0
        %1041 = vmatpush2.msra.mxu0 0.0
        %1042 = vmatprep.subr.mxu0 0.0
        %1043 = vmatpush2.msra.mxu0 0.0
        %1044 = vmatprep.subr.mxu0 0.0
        %1045 = vmatpush2.msra.mxu0 0.0
        %1046 = vmatprep.subr.mxu0 0.0
        %1047 = vmatpush2.msra.mxu0 0.0
        %1048 = vmatprep.subr.mxu0 0.0
        %1049 = vmatpush2.msra.mxu0 0.0
        %1050 = vmatprep.subr.mxu0 0.0
        %1051 = vmatpush2.msra.mxu0 0.0
        %1052 = vmatprep.subr.mxu0 0.0
        %1053 = vmatpush2.msra.mxu0 0.0
        %1054 = vmatprep.mubr.f32.mxu0 0.0
        %1055 = vmatmul.mubr.f32.gmra.mxu0 %v750
        %v1056 = vpop.f32.mrf.mxu0
        %v1057 = vadd.f32 0.0, %v1056
        %v1058 = vpop.f32.mrf.mxu0
        %v1059 = vadd.f32 0.0, %v1058
        %1060 = vdwg.mxu0
        %1061 = vst [vmem:[%s201] sm:$0xff] %v844
        %1062 = vst [vmem:[%s201 + $0x8] sm:$0xff] %v846
        %1063 = vst [vmem:[%s201 + $0x10] sm:$0xff] %v915
        %1064 = vst [vmem:[%s201 + $0x18] sm:$0xff] %v917
        %1065 = vst [vmem:[%s201 + $0x20] sm:$0xff] %v986
        %1066 = vst [vmem:[%s201 + $0x28] sm:$0xff] %v988
        %1067 = vst [vmem:[%s201 + $0x30] sm:$0xff] %v1057
        %1068 = vst [vmem:[%s201 + $0x38] sm:$0xff] %v1059
        %s1069 = sand.u32 %s97, 1
        %s1070 = scalar_lea.sflag [#allocation4], %s1069
        %s1071 = sand.u32 %s97, 1
        %s1072 = smul.addr %s1071, 64
        %s1073 = scalar_lea.vmem [#allocation7], %s1072
        // Predicated region
        $region41: #{tpu_custom_call.1} parent=31 // pred_check
          %p1074 = pneg %p107
        $region42: #{tpu_custom_call.1} parent=31 // pred_check_branch
          %1076 = sbr.rel (%p1074) target = $region44
        $region43: #{tpu_custom_call.1} parent=31 // pred_region
          %s1078 = ssub.s32 1024, 1024
          %1079 = vsyncadd %s1070, %s1078
          %s1080 = smul.addr %s21, 8
          %s1081 = smul.addr %s1080, 128
          %s1082 = scalar_lea.hbm %s3, %s1081
          %s1084 = sshll.u32 %s1073, 4
          %s1085 = int_to_ptr.vmem [resolvable:$true] %s1084
          %1087 = dma.vmem_to_hbm [thread:$0]  %s1085, 1024, %s1082, %s1070
        $region44: #{tpu_custom_call.1} parent=31 // pred_fallthru
          _
      $region32: #{tpu_custom_call.1} parent=5 // pred_fallthru
        _
      %p1088 = scmp.le.s32.totalorder 2, %s16
      // Predicated region
      $region45: #{tpu_custom_call.1} parent=5 // pred_check
        %p1089 = pneg %p1088
      $region46: #{tpu_custom_call.1} parent=5 // pred_check_branch
        %1091 = sbr.rel (%p1089) target = $region48
      $region47: #{tpu_custom_call.1} parent=5 // pred_region
        %s1092 = ssub.s32 %s16, 2
        // Predicated region
        $region49: #{tpu_custom_call.1} parent=47 // pred_check
          %p1093 = pneg %p113
        $region50: #{tpu_custom_call.1} parent=47 // pred_check_branch
          %1095 = sbr.rel (%p1093) target = $region52
        $region51: #{tpu_custom_call.1} parent=47 // pred_region
          %s1096 = sand.u32 %s98, 1
          %s1097 = scalar_lea.sflag [#allocation4], %s1096
          %s1098 = sand.u32 %s98, 1
          %s1099 = smul.addr %s1098, 64
          %s1100 = scalar_lea.vmem [#allocation7], %s1099
          %1101 = dma.done %s1097, 1024
        $region52: #{tpu_custom_call.1} parent=47 // pred_fallthru
          _
      $region48: #{tpu_custom_call.1} parent=5 // pred_fallthru
        _
    $region6: #{tpu_custom_call.1} parent=1 // loop_footer
      %s20 = sadd.s32 1, %s16
    $region7: #{tpu_custom_call.1} parent=1 // loop_footer_branch
      %15 = sbr.rel target = $region3
    $region8: #{tpu_custom_call.1} parent=1 // loop_exit
      _
    %1102 = vsyncpa [#allocation3], 1
    %s1103 = scalar_lea.sflag [#allocation3], 1
    %1104 = vsyncpa %s1103, 1
    %1105 = vsyncpa [#allocation6], 1
    %1106 = vsyncpa [#allocation4], 1
    %s1107 = scalar_lea.sflag [#allocation4], 1
    %1108 = vsyncpa %s1107, 1

</llo_original>
